<compile_context>
chip_gen: v6e
topology: v6e:2x2x1
jax: 0.10.0
libtpu: 0.0.40
codegen_flags: <defaults>
</compile_context>

<pallas_src>
import jax
import jax.numpy as jnp
from jax.experimental import pallas as pl
from jax.experimental.pallas import tpu as pltpu


def gcn_forward_kernel(
    x_ref,        # (B*N, F)   node features, all batches stacked on the sublane dim
    adj_ref,      # (B, N, N)  dense per-batch adjacency
    w1_ref, w2_ref, w3_ref,   # BN-folded layer weights
    consts_ref,   # (6, lanes) packed: rows 0-2 = layer shifts t1',t2',t3';
                  #            row 3 = mlp bias1, row 4 = mlp bias2,
                  #            row 5 = [prelu_alpha, mlp_prelu_alpha, 0, ...]
    mw1_ref,      # (2*h3, 8)  mlp Linear(16,8) weight
    mw2_ref,      # (8, nclass)
    out_ref,      # (B, nclass)
):
    B, N, _ = adj_ref.shape
    h3 = w3_ref.shape[1]
    mh = mw1_ref.shape[1]
    nclass = mw2_ref.shape[1]

    consts = consts_ref[...]
    alpha = consts[5:6, 0:1]        # shared PReLU alpha (scalar, broadcast as (1,1))
    alpha_mlp = consts[5:6, 1:2]    # mlp PReLU alpha

    def prelu(v, a):
        return jnp.where(v > 0, v, a * v)

    def gcn_layer(h, w_ref, shift_row):
        hdim = w_ref.shape[1]
        # shared-weight matmul over ALL batches at once: (B*N, Kin) @ (Kin, hdim)
        support = jnp.dot(h, w_ref[...], preferred_element_type=jnp.float32)
        # per-batch neighborhood aggregation (static unroll, tile-aligned slices)
        rows = [
            jnp.dot(adj_ref[b], support[b * N:(b + 1) * N, :],
                    preferred_element_type=jnp.float32)
            for b in range(B)
        ]
        agg = rows[0] if B == 1 else jnp.concatenate(rows, axis=0)   # (B*N, hdim)
        shift = consts[shift_row:shift_row + 1, :hdim]               # folded BN + bias
        return prelu(agg + shift, alpha)

    h = gcn_layer(x_ref[...], w1_ref, 0)
    h = gcn_layer(h, w2_ref, 1)
    # F.dropout: identity at inference.
    h = gcn_layer(h, w3_ref, 2)                                      # (B*N, h3)

    # global mean / max pooling over the node dim, per batch.
    means, maxes = [], []
    for b in range(B):
        hb = h[b * N:(b + 1) * N, :]
        means.append(jnp.mean(hb, axis=0, keepdims=True))
        maxes.append(jnp.max(hb, axis=0, keepdims=True))
    mean_pool = means[0] if B == 1 else jnp.concatenate(means, axis=0)   # (B, h3)
    max_pool = maxes[0] if B == 1 else jnp.concatenate(maxes, axis=0)    # (B, h3)

    # mlp: Linear(16,8) on concat([mean, max]) expressed as a sum of two matmuls
    # against the row-halves of the weight (avoids a lane concat).
    mw1 = mw1_ref[...]
    m = (jnp.dot(mean_pool, mw1[:h3, :], preferred_element_type=jnp.float32)
         + jnp.dot(max_pool, mw1[h3:, :], preferred_element_type=jnp.float32)
         + consts[3:4, :mh])
    m = prelu(m, alpha_mlp)
    out = jnp.dot(m, mw2_ref[...], preferred_element_type=jnp.float32) + consts[4:5, :nclass]
    out_ref[...] = out                                               # single (B, nclass) store


def gcn_forward(x, adj, params):
    B, N, F_in = x.shape
    h1 = params["w1"].shape[1]
    h2 = params["w2"].shape[1]
    h3 = params["w3"].shape[1]
    mh = params["mlp_w1"].shape[1]
    nclass = params["mlp_w2"].shape[1]
    eps = 1e-5

    # Fold eval-mode BatchNorm (and the graph-conv bias) into weight / shift on host.
    def fold(w, b, g, beta, rm, rv):
        s = g / jnp.sqrt(rv + eps)
        return w * s[None, :], s * (b - rm) + beta

    w1p, t1 = fold(params["w1"], params["b1"], params["bn1_g"], params["bn1_b"],
                   params["bn1_m"], params["bn1_v"])
    w2p, t2 = fold(params["w2"], params["b2"], params["bn2_g"], params["bn2_b"],
                   params["bn2_m"], params["bn2_v"])
    w3p, t3 = fold(params["w3"], params["b3"], params["bn3_g"], params["bn3_b"],
                   params["bn3_m"], params["bn3_v"])

    # Pack all small per-channel constants + the two PReLU alphas into one array.
    lanes = max(h1, h2, h3, mh, nclass)
    consts = jnp.zeros((6, lanes), jnp.float32)
    consts = consts.at[0, :h1].set(t1)
    consts = consts.at[1, :h2].set(t2)
    consts = consts.at[2, :h3].set(t3)
    consts = consts.at[3, :mh].set(params["mlp_b1"])
    consts = consts.at[4, :nclass].set(params["mlp_b2"])
    consts = consts.at[5, 0].set(params["prelu_alpha"])
    consts = consts.at[5, 1].set(params["mlp_prelu_alpha"])

    operands = (
        x.reshape(B * N, F_in),   # stack batches on the sublane dim (free host reshape)
        adj,
        w1p, w2p, w3p,
        consts,
        params["mlp_w1"], params["mlp_w2"],
    )

    out = pl.pallas_call(
        gcn_forward_kernel,
        out_shape=jax.ShapeDtypeStruct((B, nclass), jnp.float32),
        in_specs=[pl.BlockSpec(memory_space=pltpu.MemorySpace.VMEM) for _ in operands],
        out_specs=pl.BlockSpec(memory_space=pltpu.MemorySpace.VMEM),
    )(*operands)
    return out


def gcn_reference(x, adj, params):
    """Pure-JAX reference of the same (eval-mode) forward pass."""
    eps = 1e-5
    alpha = params["prelu_alpha"]

    def layer(h, w, b, g, be, rm, rv):
        o = jnp.einsum("bnm,bmh->bnh", adj, jnp.einsum("bnf,fh->bnh", h, w)) + b
        o = g * (o - rm) / jnp.sqrt(rv + eps) + be
        return jnp.where(o > 0, o, alpha * o)

    h = layer(x, params["w1"], params["b1"], params["bn1_g"], params["bn1_b"],
              params["bn1_m"], params["bn1_v"])
    h = layer(h, params["w2"], params["b2"], params["bn2_g"], params["bn2_b"],
              params["bn2_m"], params["bn2_v"])
    h = layer(h, params["w3"], params["b3"], params["bn3_g"], params["bn3_b"],
              params["bn3_m"], params["bn3_v"])
    pooled = jnp.concatenate([jnp.mean(h, axis=1), jnp.max(h, axis=1)], axis=1)
    m = pooled @ params["mlp_w1"] + params["mlp_b1"]
    m = jnp.where(m > 0, m, params["mlp_prelu_alpha"] * m)
    return m @ params["mlp_w2"] + params["mlp_b2"]


def init_params(key, nfeat, nhid, nclass):
    ks = iter(jax.random.split(key, 32))
    p = {}

    def w(shape, scale=0.2):
        return scale * jax.random.normal(next(ks), shape, jnp.float32)

    h1, h2, h3 = nhid
    p["w1"], p["b1"] = w((nfeat, h1)), w((h1,), 0.05)
    p["w2"], p["b2"] = w((h1, h2)), w((h2,), 0.05)
    p["w3"], p["b3"] = w((h2, h3)), w((h3,), 0.05)
    for i, h in zip((1, 2, 3), (h1, h2, h3)):
        p[f"bn{i}_g"] = 1.0 + 0.1 * jax.random.normal(next(ks), (h,), jnp.float32)
        p[f"bn{i}_b"] = 0.1 * jax.random.normal(next(ks), (h,), jnp.float32)
        p[f"bn{i}_m"] = 0.1 * jax.random.normal(next(ks), (h,), jnp.float32)
        p[f"bn{i}_v"] = 1.0 + 0.1 * jnp.abs(jax.random.normal(next(ks), (h,), jnp.float32))
    p["prelu_alpha"] = jnp.float32(0.25)      # nn.PReLU default init
    p["mlp_w1"], p["mlp_b1"] = w((2 * h3, 8)), w((8,), 0.05)
    p["mlp_prelu_alpha"] = jnp.float32(0.25)
    p["mlp_w2"], p["mlp_b2"] = w((8, nclass)), w((nclass,), 0.05)
    return p


if __name__ == "__main__":
    B, N = 2, 16          # batch, nodes
    nfeat = 16
    nhid = [32, 16, 8]    # nhid[-1]*2 == 16 to match nn.Linear(16, 8) in the mlp
    nclass = 4

    key = jax.random.PRNGKey(0)
    kx, ka, kp = jax.random.split(key, 3)
    x = jax.random.normal(kx, (B, N, nfeat), jnp.float32)
    adj_raw = jax.random.uniform(ka, (B, N, N), jnp.float32)
    adj = adj_raw / jnp.sum(adj_raw, axis=-1, keepdims=True)   # row-normalized adjacency

    params = init_params(kp, nfeat, nhid, nclass)

    out = gcn_forward(x, adj, params)
    jax.block_until_ready(out)

    ref = gcn_reference(x, adj, params)
    assert out.shape == (B, nclass)
    assert jnp.allclose(out, ref, rtol=1e-3, atol=1e-3), (out, ref)
    print("KERNEL_OK")
</pallas_src>

<mosaic_0001>
module attributes {stable_mosaic.version = 11 : i64} {
  func.func @gcn_forward_kernel(%arg0: memref<32x16xf32, #tpu.memory_space<vmem>>, %arg1: memref<2x16x16xf32, #tpu.memory_space<vmem>>, %arg2: memref<16x32xf32, #tpu.memory_space<vmem>>, %arg3: memref<32x16xf32, #tpu.memory_space<vmem>>, %arg4: memref<16x8xf32, #tpu.memory_space<vmem>>, %arg5: memref<6x32xf32, #tpu.memory_space<vmem>>, %arg6: memref<16x8xf32, #tpu.memory_space<vmem>>, %arg7: memref<8x4xf32, #tpu.memory_space<vmem>>, %arg8: memref<2x4xf32, #tpu.memory_space<vmem>>) attributes {dimension_semantics = [], scalar_prefetch = 0 : i64, scratch_operands = 0 : i64, tpu.core_type = #tpu.core_type<tc>} {
    %c0 = arith.constant 0 : index
    %c0_0 = arith.constant 0 : index
    %0 = vector.load %arg5[%c0, %c0_0] : memref<6x32xf32, #tpu.memory_space<vmem>>, vector<6x32xf32>
    %1 = vector.extract_strided_slice %0 {offsets = [5, 0], sizes = [1, 1], strides = [1, 1]} : vector<6x32xf32> to vector<1x1xf32>
    %2 = vector.extract_strided_slice %0 {offsets = [5, 1], sizes = [1, 1], strides = [1, 1]} : vector<6x32xf32> to vector<1x1xf32>
    %c0_1 = arith.constant 0 : index
    %c0_2 = arith.constant 0 : index
    %3 = vector.load %arg0[%c0_1, %c0_2] : memref<32x16xf32, #tpu.memory_space<vmem>>, vector<32x16xf32>
    %c0_3 = arith.constant 0 : index
    %c0_4 = arith.constant 0 : index
    %4 = vector.load %arg2[%c0_3, %c0_4] : memref<16x32xf32, #tpu.memory_space<vmem>>, vector<16x32xf32>
    %cst = arith.constant dense<0.000000e+00> : vector<32x32xf32>
    %5 = tpu.matmul %3, %4, %cst {dimension_numbers = #tpu.dot_dimension_numbers<[1], [0], [0], [1], [0, 0, 1, 1], [], []>} : vector<32x16xf32>, vector<16x32xf32>, vector<32x32xf32> -> vector<32x32xf32>
    %c0_5 = arith.constant 0 : index
    %c0_6 = arith.constant 0 : index
    %c0_7 = arith.constant 0 : index
    %6 = vector.load %arg1[%c0_5, %c0_6, %c0_7] : memref<2x16x16xf32, #tpu.memory_space<vmem>>, vector<1x16x16xf32>
    %7 = vector.shape_cast %6 : vector<1x16x16xf32> to vector<16x16xf32>
    %8 = vector.extract_strided_slice %5 {offsets = [0, 0], sizes = [16, 32], strides = [1, 1]} : vector<32x32xf32> to vector<16x32xf32>
    %cst_8 = arith.constant dense<0.000000e+00> : vector<16x32xf32>
    %9 = tpu.matmul %7, %8, %cst_8 {dimension_numbers = #tpu.dot_dimension_numbers<[1], [0], [0], [1], [0, 0, 1, 1], [], []>} : vector<16x16xf32>, vector<16x32xf32>, vector<16x32xf32> -> vector<16x32xf32>
    %c1 = arith.constant 1 : index
    %c0_9 = arith.constant 0 : index
    %c0_10 = arith.constant 0 : index
    %10 = vector.load %arg1[%c1, %c0_9, %c0_10] : memref<2x16x16xf32, #tpu.memory_space<vmem>>, vector<1x16x16xf32>
    %11 = vector.shape_cast %10 : vector<1x16x16xf32> to vector<16x16xf32>
    %12 = vector.extract_strided_slice %5 {offsets = [16, 0], sizes = [16, 32], strides = [1, 1]} : vector<32x32xf32> to vector<16x32xf32>
    %cst_11 = arith.constant dense<0.000000e+00> : vector<16x32xf32>
    %13 = tpu.matmul %11, %12, %cst_11 {dimension_numbers = #tpu.dot_dimension_numbers<[1], [0], [0], [1], [0, 0, 1, 1], [], []>} : vector<16x16xf32>, vector<16x32xf32>, vector<16x32xf32> -> vector<16x32xf32>
    %14 = tpu.concatenate %9, %13 in 0 : vector<16x32xf32>, vector<16x32xf32> -> vector<32x32xf32>
    %15 = vector.extract_strided_slice %0 {offsets = [0, 0], sizes = [1, 32], strides = [1, 1]} : vector<6x32xf32> to vector<1x32xf32>
    %16 = vector.broadcast %15 : vector<1x32xf32> to vector<32x32xf32>
    %17 = arith.addf %14, %16 : vector<32x32xf32>
    %cst_12 = arith.constant 0.000000e+00 : f32
    %18 = vector.broadcast %cst_12 : f32 to vector<32x32xf32>
    %19 = arith.cmpf ogt, %17, %18 : vector<32x32xf32>
    %20 = vector.broadcast %1 : vector<1x1xf32> to vector<32x32xf32>
    %21 = arith.mulf %20, %17 : vector<32x32xf32>
    %22 = arith.select %19, %17, %21 : vector<32x32xi1>, vector<32x32xf32>
    %c0_13 = arith.constant 0 : index
    %c0_14 = arith.constant 0 : index
    %23 = vector.load %arg3[%c0_13, %c0_14] : memref<32x16xf32, #tpu.memory_space<vmem>>, vector<32x16xf32>
    %cst_15 = arith.constant dense<0.000000e+00> : vector<32x16xf32>
    %24 = tpu.matmul %22, %23, %cst_15 {dimension_numbers = #tpu.dot_dimension_numbers<[1], [0], [0], [1], [0, 0, 1, 1], [], []>} : vector<32x32xf32>, vector<32x16xf32>, vector<32x16xf32> -> vector<32x16xf32>
    %c0_16 = arith.constant 0 : index
    %c0_17 = arith.constant 0 : index
    %c0_18 = arith.constant 0 : index
    %25 = vector.load %arg1[%c0_16, %c0_17, %c0_18] : memref<2x16x16xf32, #tpu.memory_space<vmem>>, vector<1x16x16xf32>
    %26 = vector.shape_cast %25 : vector<1x16x16xf32> to vector<16x16xf32>
    %27 = vector.extract_strided_slice %24 {offsets = [0, 0], sizes = [16, 16], strides = [1, 1]} : vector<32x16xf32> to vector<16x16xf32>
    %cst_19 = arith.constant dense<0.000000e+00> : vector<16x16xf32>
    %28 = tpu.matmul %26, %27, %cst_19 {dimension_numbers = #tpu.dot_dimension_numbers<[1], [0], [0], [1], [0, 0, 1, 1], [], []>} : vector<16x16xf32>, vector<16x16xf32>, vector<16x16xf32> -> vector<16x16xf32>
    %c1_20 = arith.constant 1 : index
    %c0_21 = arith.constant 0 : index
    %c0_22 = arith.constant 0 : index
    %29 = vector.load %arg1[%c1_20, %c0_21, %c0_22] : memref<2x16x16xf32, #tpu.memory_space<vmem>>, vector<1x16x16xf32>
    %30 = vector.shape_cast %29 : vector<1x16x16xf32> to vector<16x16xf32>
    %31 = vector.extract_strided_slice %24 {offsets = [16, 0], sizes = [16, 16], strides = [1, 1]} : vector<32x16xf32> to vector<16x16xf32>
    %cst_23 = arith.constant dense<0.000000e+00> : vector<16x16xf32>
    %32 = tpu.matmul %30, %31, %cst_23 {dimension_numbers = #tpu.dot_dimension_numbers<[1], [0], [0], [1], [0, 0, 1, 1], [], []>} : vector<16x16xf32>, vector<16x16xf32>, vector<16x16xf32> -> vector<16x16xf32>
    %33 = tpu.concatenate %28, %32 in 0 : vector<16x16xf32>, vector<16x16xf32> -> vector<32x16xf32>
    %34 = vector.extract_strided_slice %0 {offsets = [1, 0], sizes = [1, 16], strides = [1, 1]} : vector<6x32xf32> to vector<1x16xf32>
    %35 = vector.broadcast %34 : vector<1x16xf32> to vector<32x16xf32>
    %36 = arith.addf %33, %35 : vector<32x16xf32>
    %cst_24 = arith.constant 0.000000e+00 : f32
    %37 = vector.broadcast %cst_24 : f32 to vector<32x16xf32>
    %38 = arith.cmpf ogt, %36, %37 : vector<32x16xf32>
    %39 = vector.broadcast %1 : vector<1x1xf32> to vector<32x16xf32>
    %40 = arith.mulf %39, %36 : vector<32x16xf32>
    %41 = arith.select %38, %36, %40 : vector<32x16xi1>, vector<32x16xf32>
    %c0_25 = arith.constant 0 : index
    %c0_26 = arith.constant 0 : index
    %42 = vector.load %arg4[%c0_25, %c0_26] : memref<16x8xf32, #tpu.memory_space<vmem>>, vector<16x8xf32>
    %cst_27 = arith.constant dense<0.000000e+00> : vector<32x8xf32>
    %43 = tpu.matmul %41, %42, %cst_27 {dimension_numbers = #tpu.dot_dimension_numbers<[1], [0], [0], [1], [0, 0, 1, 1], [], []>} : vector<32x16xf32>, vector<16x8xf32>, vector<32x8xf32> -> vector<32x8xf32>
    %c0_28 = arith.constant 0 : index
    %c0_29 = arith.constant 0 : index
    %c0_30 = arith.constant 0 : index
    %44 = vector.load %arg1[%c0_28, %c0_29, %c0_30] : memref<2x16x16xf32, #tpu.memory_space<vmem>>, vector<1x16x16xf32>
    %45 = vector.shape_cast %44 : vector<1x16x16xf32> to vector<16x16xf32>
    %46 = vector.extract_strided_slice %43 {offsets = [0, 0], sizes = [16, 8], strides = [1, 1]} : vector<32x8xf32> to vector<16x8xf32>
    %cst_31 = arith.constant dense<0.000000e+00> : vector<16x8xf32>
    %47 = tpu.matmul %45, %46, %cst_31 {dimension_numbers = #tpu.dot_dimension_numbers<[1], [0], [0], [1], [0, 0, 1, 1], [], []>} : vector<16x16xf32>, vector<16x8xf32>, vector<16x8xf32> -> vector<16x8xf32>
    %c1_32 = arith.constant 1 : index
    %c0_33 = arith.constant 0 : index
    %c0_34 = arith.constant 0 : index
    %48 = vector.load %arg1[%c1_32, %c0_33, %c0_34] : memref<2x16x16xf32, #tpu.memory_space<vmem>>, vector<1x16x16xf32>
    %49 = vector.shape_cast %48 : vector<1x16x16xf32> to vector<16x16xf32>
    %50 = vector.extract_strided_slice %43 {offsets = [16, 0], sizes = [16, 8], strides = [1, 1]} : vector<32x8xf32> to vector<16x8xf32>
    %cst_35 = arith.constant dense<0.000000e+00> : vector<16x8xf32>
    %51 = tpu.matmul %49, %50, %cst_35 {dimension_numbers = #tpu.dot_dimension_numbers<[1], [0], [0], [1], [0, 0, 1, 1], [], []>} : vector<16x16xf32>, vector<16x8xf32>, vector<16x8xf32> -> vector<16x8xf32>
    %52 = tpu.concatenate %47, %51 in 0 : vector<16x8xf32>, vector<16x8xf32> -> vector<32x8xf32>
    %53 = vector.extract_strided_slice %0 {offsets = [2, 0], sizes = [1, 8], strides = [1, 1]} : vector<6x32xf32> to vector<1x8xf32>
    %54 = vector.broadcast %53 : vector<1x8xf32> to vector<32x8xf32>
    %55 = arith.addf %52, %54 : vector<32x8xf32>
    %cst_36 = arith.constant 0.000000e+00 : f32
    %56 = vector.broadcast %cst_36 : f32 to vector<32x8xf32>
    %57 = arith.cmpf ogt, %55, %56 : vector<32x8xf32>
    %58 = vector.broadcast %1 : vector<1x1xf32> to vector<32x8xf32>
    %59 = arith.mulf %58, %55 : vector<32x8xf32>
    %60 = arith.select %57, %55, %59 : vector<32x8xi1>, vector<32x8xf32>
    %61 = vector.extract_strided_slice %60 {offsets = [0, 0], sizes = [16, 8], strides = [1, 1]} : vector<32x8xf32> to vector<16x8xf32>
    %cst_37 = arith.constant dense<0.000000e+00> : vector<8xf32>
    %62 = vector.multi_reduction <add>, %61, %cst_37 [0] : vector<16x8xf32> to vector<8xf32>
    %63 = vector.shape_cast %62 : vector<8xf32> to vector<1x8xf32>
    %cst_38 = arith.constant 1.600000e+01 : f32
    %64 = vector.broadcast %cst_38 : f32 to vector<1x8xf32>
    %65 = arith.divf %63, %64 : vector<1x8xf32>
    %cst_39 = arith.constant dense<0xFF800000> : vector<8xf32>
    %66 = vector.multi_reduction <maximumf>, %61, %cst_39 [0] : vector<16x8xf32> to vector<8xf32>
    %67 = vector.shape_cast %66 : vector<8xf32> to vector<1x8xf32>
    %68 = vector.extract_strided_slice %60 {offsets = [16, 0], sizes = [16, 8], strides = [1, 1]} : vector<32x8xf32> to vector<16x8xf32>
    %cst_40 = arith.constant dense<0.000000e+00> : vector<8xf32>
    %69 = vector.multi_reduction <add>, %68, %cst_40 [0] : vector<16x8xf32> to vector<8xf32>
    %70 = vector.shape_cast %69 : vector<8xf32> to vector<1x8xf32>
    %cst_41 = arith.constant 1.600000e+01 : f32
    %71 = vector.broadcast %cst_41 : f32 to vector<1x8xf32>
    %72 = arith.divf %70, %71 : vector<1x8xf32>
    %cst_42 = arith.constant dense<0xFF800000> : vector<8xf32>
    %73 = vector.multi_reduction <maximumf>, %68, %cst_42 [0] : vector<16x8xf32> to vector<8xf32>
    %74 = vector.shape_cast %73 : vector<8xf32> to vector<1x8xf32>
    %75 = tpu.concatenate %65, %72 in 0 : vector<1x8xf32>, vector<1x8xf32> -> vector<2x8xf32>
    %76 = tpu.concatenate %67, %74 in 0 : vector<1x8xf32>, vector<1x8xf32> -> vector<2x8xf32>
    %c0_43 = arith.constant 0 : index
    %c0_44 = arith.constant 0 : index
    %77 = vector.load %arg6[%c0_43, %c0_44] : memref<16x8xf32, #tpu.memory_space<vmem>>, vector<16x8xf32>
    %78 = vector.extract_strided_slice %77 {offsets = [0, 0], sizes = [8, 8], strides = [1, 1]} : vector<16x8xf32> to vector<8x8xf32>
    %cst_45 = arith.constant dense<0.000000e+00> : vector<2x8xf32>
    %79 = tpu.matmul %75, %78, %cst_45 {dimension_numbers = #tpu.dot_dimension_numbers<[1], [0], [0], [1], [0, 0, 1, 1], [], []>} : vector<2x8xf32>, vector<8x8xf32>, vector<2x8xf32> -> vector<2x8xf32>
    %80 = vector.extract_strided_slice %77 {offsets = [8, 0], sizes = [8, 8], strides = [1, 1]} : vector<16x8xf32> to vector<8x8xf32>
    %cst_46 = arith.constant dense<0.000000e+00> : vector<2x8xf32>
    %81 = tpu.matmul %76, %80, %cst_46 {dimension_numbers = #tpu.dot_dimension_numbers<[1], [0], [0], [1], [0, 0, 1, 1], [], []>} : vector<2x8xf32>, vector<8x8xf32>, vector<2x8xf32> -> vector<2x8xf32>
    %82 = arith.addf %79, %81 : vector<2x8xf32>
    %83 = vector.extract_strided_slice %0 {offsets = [3, 0], sizes = [1, 8], strides = [1, 1]} : vector<6x32xf32> to vector<1x8xf32>
    %84 = vector.broadcast %83 : vector<1x8xf32> to vector<2x8xf32>
    %85 = arith.addf %82, %84 : vector<2x8xf32>
    %cst_47 = arith.constant 0.000000e+00 : f32
    %86 = vector.broadcast %cst_47 : f32 to vector<2x8xf32>
    %87 = arith.cmpf ogt, %85, %86 : vector<2x8xf32>
    %88 = vector.broadcast %2 : vector<1x1xf32> to vector<2x8xf32>
    %89 = arith.mulf %88, %85 : vector<2x8xf32>
    %90 = arith.select %87, %85, %89 : vector<2x8xi1>, vector<2x8xf32>
    %c0_48 = arith.constant 0 : index
    %c0_49 = arith.constant 0 : index
    %91 = vector.load %arg7[%c0_48, %c0_49] : memref<8x4xf32, #tpu.memory_space<vmem>>, vector<8x4xf32>
    %cst_50 = arith.constant dense<0.000000e+00> : vector<2x4xf32>
    %92 = tpu.matmul %90, %91, %cst_50 {dimension_numbers = #tpu.dot_dimension_numbers<[1], [0], [0], [1], [0, 0, 1, 1], [], []>} : vector<2x8xf32>, vector<8x4xf32>, vector<2x4xf32> -> vector<2x4xf32>
    %93 = vector.extract_strided_slice %0 {offsets = [4, 0], sizes = [1, 4], strides = [1, 1]} : vector<6x32xf32> to vector<1x4xf32>
    %94 = vector.broadcast %93 : vector<1x4xf32> to vector<2x4xf32>
    %95 = arith.addf %92, %94 : vector<2x4xf32>
    %c0_51 = arith.constant 0 : index
    %c0_52 = arith.constant 0 : index
    %96 = vector.load %arg8[%c0_51, %c0_52] : memref<2x4xf32, #tpu.memory_space<vmem>>, vector<2x4xf32>
    tpu.vector_store %arg8[%c0_51, %c0_52], %95 {strides = array<i32>} : memref<2x4xf32, #tpu.memory_space<vmem>>, vector<2x4xf32>,
    return
  }
}

</mosaic_0001>

<llo_original>
// kernel: tpu_custom_call.1
$region0: #{tpu_custom_call.1}
  #allocation0 [shape = 'u32[]', space=smem, size = 0x4, offset = 0x4, fixed_abs, tag = 'smem constant byte address 0x4 - core index']
  #allocation1 [shape = 'u32[144,128]{1,0:T(1,128)}', space=vmem, size = 0x12000, scoped, tag = 'internal scratch']
  %s0 = inlined_call_operand.vmem [shape: f32[32,16], index: 0, kind: input, shape index: {}]
  %s1 = inlined_call_operand.vmem [shape: f32[2,16,16], index: 1, kind: input, shape index: {}]
  %s2 = inlined_call_operand.vmem [shape: f32[16,32], index: 2, kind: input, shape index: {}]
  %s3 = inlined_call_operand.vmem [shape: f32[32,16], index: 3, kind: input, shape index: {}]
  %s4 = inlined_call_operand.vmem [shape: f32[16,8], index: 4, kind: input, shape index: {}]
  %s5 = inlined_call_operand.vmem [shape: f32[6,32], index: 5, kind: input, shape index: {}]
  %s6 = inlined_call_operand.vmem [shape: f32[16,8], index: 6, kind: input, shape index: {}]
  %s7 = inlined_call_operand.vmem [shape: f32[8,4], index: 7, kind: input, shape index: {}]
  %s8 = inlined_call_operand.hbm [shape: f32[2,4], index: 8, kind: output, shape index: {}]
  %s9 = sld [smem:[#allocation0]]
  $region42: #{tpu_custom_call.1} parent=0
    _
  %s11 = ssub.s32 1, %s9
  %s12 = scalar_select 0, %s11, %s9
  $region1: #{tpu_custom_call.1} parent=0
    #allocation2 [shape = 'u8[1024]{0}', space=vmem, size = 0x400, scoped, tag = 'output window, operand 0, single buffered']
    #allocation3 [shape = 's32[1]{0}', space=sflag, size = 0x4, scoped, tag = 'scoped memory for tpu_custom_call.1']
    %13 = vsyncpa [#allocation3], 0
    // Predicated region
    $region2: #{tpu_custom_call.1} parent=1 // pred_check
      _
    $region3: #{tpu_custom_call.1} parent=1 // pred_check_branch
      %15 = sbr.rel (0) target = $region5
    $region4: #{tpu_custom_call.1} parent=1 // pred_region
      _
    $region5: #{tpu_custom_call.1} parent=1 // pred_fallthru
      _
    // Predicated region
    $region6: #{tpu_custom_call.1} parent=1 // pred_check
      _
    $region7: #{tpu_custom_call.1} parent=1 // pred_check_branch
      %17 = sbr.rel (0) target = $region9
    $region8: #{tpu_custom_call.1} parent=1 // pred_region
      _
    $region9: #{tpu_custom_call.1} parent=1 // pred_fallthru
      _
    // Predicated region
    $region10: #{tpu_custom_call.1} parent=1 // pred_check
      _
    $region11: #{tpu_custom_call.1} parent=1 // pred_check_branch
      %19 = sbr.rel (0) target = $region13
    $region12: #{tpu_custom_call.1} parent=1 // pred_region
      _
    $region13: #{tpu_custom_call.1} parent=1 // pred_fallthru
      _
    // Predicated region
    $region14: #{tpu_custom_call.1} parent=1 // pred_check
      _
    $region15: #{tpu_custom_call.1} parent=1 // pred_check_branch
      %21 = sbr.rel (0) target = $region17
    $region16: #{tpu_custom_call.1} parent=1 // pred_region
      _
    $region17: #{tpu_custom_call.1} parent=1 // pred_fallthru
      _
    // Predicated region
    $region18: #{tpu_custom_call.1} parent=1 // pred_check
      _
    $region19: #{tpu_custom_call.1} parent=1 // pred_check_branch
      %23 = sbr.rel (0) target = $region21
    $region20: #{tpu_custom_call.1} parent=1 // pred_region
      _
    $region21: #{tpu_custom_call.1} parent=1 // pred_fallthru
      _
    // Predicated region
    $region22: #{tpu_custom_call.1} parent=1 // pred_check
      _
    $region23: #{tpu_custom_call.1} parent=1 // pred_check_branch
      %25 = sbr.rel (0) target = $region25
    $region24: #{tpu_custom_call.1} parent=1 // pred_region
      _
    $region25: #{tpu_custom_call.1} parent=1 // pred_fallthru
      _
    // Predicated region
    $region26: #{tpu_custom_call.1} parent=1 // pred_check
      _
    $region27: #{tpu_custom_call.1} parent=1 // pred_check_branch
      %27 = sbr.rel (0) target = $region29
    $region28: #{tpu_custom_call.1} parent=1 // pred_region
      _
    $region29: #{tpu_custom_call.1} parent=1 // pred_fallthru
      _
    // Predicated region
    $region30: #{tpu_custom_call.1} parent=1 // pred_check
      _
    $region31: #{tpu_custom_call.1} parent=1 // pred_check_branch
      %29 = sbr.rel (0) target = $region33
    $region32: #{tpu_custom_call.1} parent=1 // pred_region
      _
    $region33: #{tpu_custom_call.1} parent=1 // pred_fallthru
      _
    %v30 = vld [vmem:[%s5] sm:$0x3f]
    %v31 = vld [vmem:[%s0] sm:$0xff]
    %v32 = vld [vmem:[%s0 + $0x8] sm:$0xff]
    %v33 = vld [vmem:[%s0 + $0x10] sm:$0xff]
    %v34 = vld [vmem:[%s0 + $0x18] sm:$0xff]
    %v35 = vld [vmem:[%s2] sm:$0xff]
    %v36 = vld [vmem:[%s2 + $0x8] sm:$0xff]
    %vm37 = vcmask 130048
    %v39 = vsel %vm37, %v31, 0
    %v42 = vsel %vm37, %v32, 0
    %v45 = vsel %vm37, %v33, 0
    %v48 = vsel %vm37, %v34, 0
    %50 = vmatprep.subr.mxu0 0.0
    %51 = vmatpush1.msra.mxu0 0.0
    %52 = vmatprep.subr.mxu0 0.0
    %53 = vmatpush1.msra.mxu0 0.0
    %54 = vmatprep.subr.mxu0 0.0
    %55 = vmatpush1.msra.mxu0 0.0
    %56 = vmatprep.subr.mxu0 0.0
    %57 = vmatpush1.msra.mxu0 0.0
    %58 = vmatprep.subr.mxu0 0.0
    %59 = vmatpush1.msra.mxu0 0.0
    %60 = vmatprep.subr.mxu0 0.0
    %61 = vmatpush1.msra.mxu0 0.0
    %62 = vmatprep.subr.mxu0 0.0
    %63 = vmatpush1.msra.mxu0 0.0
    %64 = vmatprep.subr.mxu0 0.0
    %65 = vmatpush1.msra.mxu0 0.0
    %66 = vmatprep.subr.mxu0 0.0
    %67 = vmatpush1.msra.mxu0 0.0
    %68 = vmatprep.subr.mxu0 0.0
    %69 = vmatpush1.msra.mxu0 0.0
    %70 = vmatprep.subr.mxu0 0.0
    %71 = vmatpush1.msra.mxu0 0.0
    %72 = vmatprep.subr.mxu0 0.0
    %73 = vmatpush1.msra.mxu0 0.0
    %74 = vmatprep.subr.mxu0 0.0
    %75 = vmatpush1.msra.mxu0 0.0
    %76 = vmatprep.subr.mxu0 0.0
    %77 = vmatpush1.msra.mxu0 0.0
    %78 = vmatprep.subr.mxu0 0.0
    %79 = vmatpush1.msra.mxu0 %v36
    %80 = vmatprep.subr.mxu0 0.0
    %81 = vmatpush1.msra.mxu0 %v35
    %82 = vmatprep.subr.mxu0 0.0
    %83 = vmatpush2.msra.mxu0 0.0
    %84 = vmatprep.subr.mxu0 0.0
    %85 = vmatpush2.msra.mxu0 0.0
    %86 = vmatprep.subr.mxu0 0.0
    %87 = vmatpush2.msra.mxu0 0.0
    %88 = vmatprep.subr.mxu0 0.0
    %89 = vmatpush2.msra.mxu0 0.0
    %90 = vmatprep.subr.mxu0 0.0
    %91 = vmatpush2.msra.mxu0 0.0
    %92 = vmatprep.subr.mxu0 0.0
    %93 = vmatpush2.msra.mxu0 0.0
    %94 = vmatprep.subr.mxu0 0.0
    %95 = vmatpush2.msra.mxu0 0.0
    %96 = vmatprep.subr.mxu0 0.0
    %97 = vmatpush2.msra.mxu0 0.0
    %98 = vmatprep.subr.mxu0 0.0
    %99 = vmatpush2.msra.mxu0 0.0
    %100 = vmatprep.subr.mxu0 0.0
    %101 = vmatpush2.msra.mxu0 0.0
    %102 = vmatprep.subr.mxu0 0.0
    %103 = vmatpush2.msra.mxu0 0.0
    %104 = vmatprep.subr.mxu0 0.0
    %105 = vmatpush2.msra.mxu0 0.0
    %106 = vmatprep.subr.mxu0 0.0
    %107 = vmatpush2.msra.mxu0 0.0
    %108 = vmatprep.subr.mxu0 0.0
    %109 = vmatpush2.msra.mxu0 0.0
    %110 = vmatprep.subr.mxu0 0.0
    %111 = vmatpush2.msra.mxu0 0.0
    %112 = vmatprep.subr.mxu0 0.0
    %113 = vmatpush2.msra.mxu0 0.0
    %114 = vmatprep.mubr.f32.mxu0 0.0
    %115 = vmatmul.mubr.f32.gmra.mxu0 %v39
    %v116 = vpop.f32.mrf.mxu0
    %v117 = vadd.f32 0.0, %v116
    %v118 = vpop.f32.mrf.mxu0
    %119 = vmatprep.mubr.f32.mxu0 0.0
    %120 = vmatmul.mubr.f32.gmra.mxu0 %v42
    %v121 = vpop.f32.mrf.mxu0
    %v122 = vadd.f32 0.0, %v121
    %v123 = vpop.f32.mrf.mxu0
    %124 = vmatprep.mubr.f32.mxu0 0.0
    %125 = vmatmul.mubr.f32.gmra.mxu0 %v45
    %v126 = vpop.f32.mrf.mxu0
    %v127 = vadd.f32 0.0, %v126
    %v128 = vpop.f32.mrf.mxu0
    %129 = vmatprep.mubr.f32.mxu0 0.0
    %130 = vmatmul.mubr.f32.gmra.mxu0 %v48
    %v131 = vpop.f32.mrf.mxu0
    %v132 = vadd.f32 0.0, %v131
    %v133 = vpop.f32.mrf.mxu0
    %134 = vdwg.mxu0
    %v135 = vld [vmem:[%s1] sm:$0xff]
    %v136 = vld [vmem:[%s1 + $0x8] sm:$0xff]
    %v138 = vsel %vm37, %v135, 0
    %v141 = vsel %vm37, %v136, 0
    %143 = vmatprep.subr.mxu0 0.0
    %144 = vmatpush1.msra.mxu0 0.0
    %145 = vmatprep.subr.mxu0 0.0
    %146 = vmatpush1.msra.mxu0 0.0
    %147 = vmatprep.subr.mxu0 0.0
    %148 = vmatpush1.msra.mxu0 0.0
    %149 = vmatprep.subr.mxu0 0.0
    %150 = vmatpush1.msra.mxu0 0.0
    %151 = vmatprep.subr.mxu0 0.0
    %152 = vmatpush1.msra.mxu0 0.0
    %153 = vmatprep.subr.mxu0 0.0
    %154 = vmatpush1.msra.mxu0 0.0
    %155 = vmatprep.subr.mxu0 0.0
    %156 = vmatpush1.msra.mxu0 0.0
    %157 = vmatprep.subr.mxu0 0.0
    %158 = vmatpush1.msra.mxu0 0.0
    %159 = vmatprep.subr.mxu0 0.0
    %160 = vmatpush1.msra.mxu0 0.0
    %161 = vmatprep.subr.mxu0 0.0
    %162 = vmatpush1.msra.mxu0 0.0
    %163 = vmatprep.subr.mxu0 0.0
    %164 = vmatpush1.msra.mxu0 0.0
    %165 = vmatprep.subr.mxu0 0.0
    %166 = vmatpush1.msra.mxu0 0.0
    %167 = vmatprep.subr.mxu0 0.0
    %168 = vmatpush1.msra.mxu0 0.0
    %169 = vmatprep.subr.mxu0 0.0
    %170 = vmatpush1.msra.mxu0 0.0
    %171 = vmatprep.subr.mxu0 0.0
    %172 = vmatpush1.msra.mxu0 %v122
    %173 = vmatprep.subr.mxu0 0.0
    %174 = vmatpush1.msra.mxu0 %v117
    %175 = vmatprep.subr.mxu0 0.0
    %176 = vmatpush2.msra.mxu0 0.0
    %177 = vmatprep.subr.mxu0 0.0
    %178 = vmatpush2.msra.mxu0 0.0
    %179 = vmatprep.subr.mxu0 0.0
    %180 = vmatpush2.msra.mxu0 0.0
    %181 = vmatprep.subr.mxu0 0.0
    %182 = vmatpush2.msra.mxu0 0.0
    %183 = vmatprep.subr.mxu0 0.0
    %184 = vmatpush2.msra.mxu0 0.0
    %185 = vmatprep.subr.mxu0 0.0
    %186 = vmatpush2.msra.mxu0 0.0
    %187 = vmatprep.subr.mxu0 0.0
    %188 = vmatpush2.msra.mxu0 0.0
    %189 = vmatprep.subr.mxu0 0.0
    %190 = vmatpush2.msra.mxu0 0.0
    %191 = vmatprep.subr.mxu0 0.0
    %192 = vmatpush2.msra.mxu0 0.0
    %193 = vmatprep.subr.mxu0 0.0
    %194 = vmatpush2.msra.mxu0 0.0
    %195 = vmatprep.subr.mxu0 0.0
    %196 = vmatpush2.msra.mxu0 0.0
    %197 = vmatprep.subr.mxu0 0.0
    %198 = vmatpush2.msra.mxu0 0.0
    %199 = vmatprep.subr.mxu0 0.0
    %200 = vmatpush2.msra.mxu0 0.0
    %201 = vmatprep.subr.mxu0 0.0
    %202 = vmatpush2.msra.mxu0 0.0
    %203 = vmatprep.subr.mxu0 0.0
    %204 = vmatpush2.msra.mxu0 0.0
    %205 = vmatprep.subr.mxu0 0.0
    %206 = vmatpush2.msra.mxu0 0.0
    %207 = vmatprep.mubr.f32.mxu0 0.0
    %208 = vmatmul.mubr.f32.gmra.mxu0 %v138
    %v209 = vpop.f32.mrf.mxu0
    %v210 = vadd.f32 0.0, %v209
    %v211 = vpop.f32.mrf.mxu0
    %212 = vmatprep.mubr.f32.mxu0 0.0
    %213 = vmatmul.mubr.f32.gmra.mxu0 %v141
    %v214 = vpop.f32.mrf.mxu0
    %v215 = vadd.f32 0.0, %v214
    %v216 = vpop.f32.mrf.mxu0
    %217 = vdwg.mxu0
    %s218 = scalar_lea.vmem %s1, 16
    %v219 = vld [vmem:[%s218] sm:$0xff]
    %v220 = vld [vmem:[%s218 + $0x8] sm:$0xff]
    %v222 = vsel %vm37, %v219, 0
    %v225 = vsel %vm37, %v220, 0
    %227 = vmatprep.subr.mxu0 0.0
    %228 = vmatpush1.msra.mxu0 0.0
    %229 = vmatprep.subr.mxu0 0.0
    %230 = vmatpush1.msra.mxu0 0.0
    %231 = vmatprep.subr.mxu0 0.0
    %232 = vmatpush1.msra.mxu0 0.0
    %233 = vmatprep.subr.mxu0 0.0
    %234 = vmatpush1.msra.mxu0 0.0
    %235 = vmatprep.subr.mxu0 0.0
    %236 = vmatpush1.msra.mxu0 0.0
    %237 = vmatprep.subr.mxu0 0.0
    %238 = vmatpush1.msra.mxu0 0.0
    %239 = vmatprep.subr.mxu0 0.0
    %240 = vmatpush1.msra.mxu0 0.0
    %241 = vmatprep.subr.mxu0 0.0
    %242 = vmatpush1.msra.mxu0 0.0
    %243 = vmatprep.subr.mxu0 0.0
    %244 = vmatpush1.msra.mxu0 0.0
    %245 = vmatprep.subr.mxu0 0.0
    %246 = vmatpush1.msra.mxu0 0.0
    %247 = vmatprep.subr.mxu0 0.0
    %248 = vmatpush1.msra.mxu0 0.0
    %249 = vmatprep.subr.mxu0 0.0
    %250 = vmatpush1.msra.mxu0 0.0
    %251 = vmatprep.subr.mxu0 0.0
    %252 = vmatpush1.msra.mxu0 0.0
    %253 = vmatprep.subr.mxu0 0.0
    %254 = vmatpush1.msra.mxu0 0.0
    %255 = vmatprep.subr.mxu0 0.0
    %256 = vmatpush1.msra.mxu0 %v132
    %257 = vmatprep.subr.mxu0 0.0
    %258 = vmatpush1.msra.mxu0 %v127
    %259 = vmatprep.subr.mxu0 0.0
    %260 = vmatpush2.msra.mxu0 0.0
    %261 = vmatprep.subr.mxu0 0.0
    %262 = vmatpush2.msra.mxu0 0.0
    %263 = vmatprep.subr.mxu0 0.0
    %264 = vmatpush2.msra.mxu0 0.0
    %265 = vmatprep.subr.mxu0 0.0
    %266 = vmatpush2.msra.mxu0 0.0
    %267 = vmatprep.subr.mxu0 0.0
    %268 = vmatpush2.msra.mxu0 0.0
    %269 = vmatprep.subr.mxu0 0.0
    %270 = vmatpush2.msra.mxu0 0.0
    %271 = vmatprep.subr.mxu0 0.0
    %272 = vmatpush2.msra.mxu0 0.0
    %273 = vmatprep.subr.mxu0 0.0
    %274 = vmatpush2.msra.mxu0 0.0
    %275 = vmatprep.subr.mxu0 0.0
    %276 = vmatpush2.msra.mxu0 0.0
    %277 = vmatprep.subr.mxu0 0.0
    %278 = vmatpush2.msra.mxu0 0.0
    %279 = vmatprep.subr.mxu0 0.0
    %280 = vmatpush2.msra.mxu0 0.0
    %281 = vmatprep.subr.mxu0 0.0
    %282 = vmatpush2.msra.mxu0 0.0
    %283 = vmatprep.subr.mxu0 0.0
    %284 = vmatpush2.msra.mxu0 0.0
    %285 = vmatprep.subr.mxu0 0.0
    %286 = vmatpush2.msra.mxu0 0.0
    %287 = vmatprep.subr.mxu0 0.0
    %288 = vmatpush2.msra.mxu0 0.0
    %289 = vmatprep.subr.mxu0 0.0
    %290 = vmatpush2.msra.mxu0 0.0
    %291 = vmatprep.mubr.f32.mxu0 0.0
    %292 = vmatmul.mubr.f32.gmra.mxu0 %v222
    %v293 = vpop.f32.mrf.mxu0
    %v294 = vadd.f32 0.0, %v293
    %v295 = vpop.f32.mrf.mxu0
    %296 = vmatprep.mubr.f32.mxu0 0.0
    %297 = vmatmul.mubr.f32.gmra.mxu0 %v225
    %v298 = vpop.f32.mrf.mxu0
    %v299 = vadd.f32 0.0, %v298
    %v300 = vpop.f32.mrf.mxu0
    %301 = vdwg.mxu0
    %v302 = vlaneseq
    %v303 = vshrl.u32 %v302, 7
    %v304 = vsub.s32 0, %v303
    %v305 = vrot.slane %v30, %v304
    %v306 = vadd.f32 %v210, %v305
    %v307 = vadd.f32 %v215, %v305
    %v308 = vadd.f32 %v294, %v305
    %v309 = vadd.f32 %v299, %v305
    %vm310 = vcmp.gt.f32.partialorder %v306, 0.0
    %vm311 = vcmp.gt.f32.partialorder %v307, 0.0
    %vm312 = vcmp.gt.f32.partialorder %v308, 0.0
    %vm313 = vcmp.gt.f32.partialorder %v309, 0.0
    %v315 = vrot.slane %v30, 5
    %s316 = vtos %v315
    %v317 = vstv %s316
    %v319 = vmul.f32 %v317, %v306
    %v320 = vmul.f32 %v317, %v307
    %v321 = vmul.f32 %v317, %v308
    %v322 = vmul.f32 %v317, %v309
    %v323 = vsel %vm310, %v306, %v319
    %v324 = vsel %vm311, %v307, %v320
    %v325 = vsel %vm312, %v308, %v321
    %v326 = vsel %vm313, %v309, %v322
    %v327 = vld [vmem:[%s3] sm:$0xff]
    %v328 = vld [vmem:[%s3 + $0x8] sm:$0xff]
    %v329 = vld [vmem:[%s3 + $0x10] sm:$0xff]
    %v330 = vld [vmem:[%s3 + $0x18] sm:$0xff]
    %vm331 = vcmask 261120
    %v333 = vsel %vm331, %v323, 0
    %v336 = vsel %vm331, %v324, 0
    %v339 = vsel %vm331, %v325, 0
    %v342 = vsel %vm331, %v326, 0
    %344 = vmatprep.subr.mxu0 0.0
    %345 = vmatpush1.msra.mxu0 0.0
    %346 = vmatprep.subr.mxu0 0.0
    %347 = vmatpush1.msra.mxu0 0.0
    %348 = vmatprep.subr.mxu0 0.0
    %349 = vmatpush1.msra.mxu0 0.0
    %350 = vmatprep.subr.mxu0 0.0
    %351 = vmatpush1.msra.mxu0 0.0
    %352 = vmatprep.subr.mxu0 0.0
    %353 = vmatpush1.msra.mxu0 0.0
    %354 = vmatprep.subr.mxu0 0.0
    %355 = vmatpush1.msra.mxu0 0.0
    %356 = vmatprep.subr.mxu0 0.0
    %357 = vmatpush1.msra.mxu0 0.0
    %358 = vmatprep.subr.mxu0 0.0
    %359 = vmatpush1.msra.mxu0 0.0
    %360 = vmatprep.subr.mxu0 0.0
    %361 = vmatpush1.msra.mxu0 0.0
    %362 = vmatprep.subr.mxu0 0.0
    %363 = vmatpush1.msra.mxu0 0.0
    %364 = vmatprep.subr.mxu0 0.0
    %365 = vmatpush1.msra.mxu0 0.0
    %366 = vmatprep.subr.mxu0 0.0
    %367 = vmatpush1.msra.mxu0 0.0
    %368 = vmatprep.subr.mxu0 0.0
    %369 = vmatpush1.msra.mxu0 %v330
    %370 = vmatprep.subr.mxu0 0.0
    %371 = vmatpush1.msra.mxu0 %v329
    %372 = vmatprep.subr.mxu0 0.0
    %373 = vmatpush1.msra.mxu0 %v328
    %374 = vmatprep.subr.mxu0 0.0
    %375 = vmatpush1.msra.mxu0 %v327
    %376 = vmatprep.subr.mxu0 0.0
    %377 = vmatpush2.msra.mxu0 0.0
    %378 = vmatprep.subr.mxu0 0.0
    %379 = vmatpush2.msra.mxu0 0.0
    %380 = vmatprep.subr.mxu0 0.0
    %381 = vmatpush2.msra.mxu0 0.0
    %382 = vmatprep.subr.mxu0 0.0
    %383 = vmatpush2.msra.mxu0 0.0
    %384 = vmatprep.subr.mxu0 0.0
    %385 = vmatpush2.msra.mxu0 0.0
    %386 = vmatprep.subr.mxu0 0.0
    %387 = vmatpush2.msra.mxu0 0.0
    %388 = vmatprep.subr.mxu0 0.0
    %389 = vmatpush2.msra.mxu0 0.0
    %390 = vmatprep.subr.mxu0 0.0
    %391 = vmatpush2.msra.mxu0 0.0
    %392 = vmatprep.subr.mxu0 0.0
    %393 = vmatpush2.msra.mxu0 0.0
    %394 = vmatprep.subr.mxu0 0.0
    %395 = vmatpush2.msra.mxu0 0.0
    %396 = vmatprep.subr.mxu0 0.0
    %397 = vmatpush2.msra.mxu0 0.0
    %398 = vmatprep.subr.mxu0 0.0
    %399 = vmatpush2.msra.mxu0 0.0
    %400 = vmatprep.subr.mxu0 0.0
    %401 = vmatpush2.msra.mxu0 0.0
    %402 = vmatprep.subr.mxu0 0.0
    %403 = vmatpush2.msra.mxu0 0.0
    %404 = vmatprep.subr.mxu0 0.0
    %405 = vmatpush2.msra.mxu0 0.0
    %406 = vmatprep.subr.mxu0 0.0
    %407 = vmatpush2.msra.mxu0 0.0
    %408 = vmatprep.mubr.f32.mxu0 0.0
    %409 = vmatmul.mubr.f32.gmra.mxu0 %v333
    %v410 = vpop.f32.mrf.mxu0
    %v411 = vadd.f32 0.0, %v410
    %v412 = vpop.f32.mrf.mxu0
    %413 = vmatprep.mubr.f32.mxu0 0.0
    %414 = vmatmul.mubr.f32.gmra.mxu0 %v336
    %v415 = vpop.f32.mrf.mxu0
    %v416 = vadd.f32 0.0, %v415
    %v417 = vpop.f32.mrf.mxu0
    %418 = vmatprep.mubr.f32.mxu0 0.0
    %419 = vmatmul.mubr.f32.gmra.mxu0 %v339
    %v420 = vpop.f32.mrf.mxu0
    %v421 = vadd.f32 0.0, %v420
    %v422 = vpop.f32.mrf.mxu0
    %423 = vmatprep.mubr.f32.mxu0 0.0
    %424 = vmatmul.mubr.f32.gmra.mxu0 %v342
    %v425 = vpop.f32.mrf.mxu0
    %v426 = vadd.f32 0.0, %v425
    %v427 = vpop.f32.mrf.mxu0
    %428 = vdwg.mxu0
    %429 = vmatprep.subr.mxu0 0.0
    %430 = vmatpush1.msra.mxu0 0.0
    %431 = vmatprep.subr.mxu0 0.0
    %432 = vmatpush1.msra.mxu0 0.0
    %433 = vmatprep.subr.mxu0 0.0
    %434 = vmatpush1.msra.mxu0 0.0
    %435 = vmatprep.subr.mxu0 0.0
    %436 = vmatpush1.msra.mxu0 0.0
    %437 = vmatprep.subr.mxu0 0.0
    %438 = vmatpush1.msra.mxu0 0.0
    %439 = vmatprep.subr.mxu0 0.0
    %440 = vmatpush1.msra.mxu0 0.0
    %441 = vmatprep.subr.mxu0 0.0
    %442 = vmatpush1.msra.mxu0 0.0
    %443 = vmatprep.subr.mxu0 0.0
    %444 = vmatpush1.msra.mxu0 0.0
    %445 = vmatprep.subr.mxu0 0.0
    %446 = vmatpush1.msra.mxu0 0.0
    %447 = vmatprep.subr.mxu0 0.0
    %448 = vmatpush1.msra.mxu0 0.0
    %449 = vmatprep.subr.mxu0 0.0
    %450 = vmatpush1.msra.mxu0 0.0
    %451 = vmatprep.subr.mxu0 0.0
    %452 = vmatpush1.msra.mxu0 0.0
    %453 = vmatprep.subr.mxu0 0.0
    %454 = vmatpush1.msra.mxu0 0.0
    %455 = vmatprep.subr.mxu0 0.0
    %456 = vmatpush1.msra.mxu0 0.0
    %457 = vmatprep.subr.mxu0 0.0
    %458 = vmatpush1.msra.mxu0 %v416
    %459 = vmatprep.subr.mxu0 0.0
    %460 = vmatpush1.msra.mxu0 %v411
    %461 = vmatprep.subr.mxu0 0.0
    %462 = vmatpush2.msra.mxu0 0.0
    %463 = vmatprep.subr.mxu0 0.0
    %464 = vmatpush2.msra.mxu0 0.0
    %465 = vmatprep.subr.mxu0 0.0
    %466 = vmatpush2.msra.mxu0 0.0
    %467 = vmatprep.subr.mxu0 0.0
    %468 = vmatpush2.msra.mxu0 0.0
    %469 = vmatprep.subr.mxu0 0.0
    %470 = vmatpush2.msra.mxu0 0.0
    %471 = vmatprep.subr.mxu0 0.0
    %472 = vmatpush2.msra.mxu0 0.0
    %473 = vmatprep.subr.mxu0 0.0
    %474 = vmatpush2.msra.mxu0 0.0
    %475 = vmatprep.subr.mxu0 0.0
    %476 = vmatpush2.msra.mxu0 0.0
    %477 = vmatprep.subr.mxu0 0.0
    %478 = vmatpush2.msra.mxu0 0.0
    %479 = vmatprep.subr.mxu0 0.0
    %480 = vmatpush2.msra.mxu0 0.0
    %481 = vmatprep.subr.mxu0 0.0
    %482 = vmatpush2.msra.mxu0 0.0
    %483 = vmatprep.subr.mxu0 0.0
    %484 = vmatpush2.msra.mxu0 0.0
    %485 = vmatprep.subr.mxu0 0.0
    %486 = vmatpush2.msra.mxu0 0.0
    %487 = vmatprep.subr.mxu0 0.0
    %488 = vmatpush2.msra.mxu0 0.0
    %489 = vmatprep.subr.mxu0 0.0
    %490 = vmatpush2.msra.mxu0 0.0
    %491 = vmatprep.subr.mxu0 0.0
    %492 = vmatpush2.msra.mxu0 0.0
    %493 = vmatprep.mubr.f32.mxu0 0.0
    %494 = vmatmul.mubr.f32.gmra.mxu0 %v138
    %v495 = vpop.f32.mrf.mxu0
    %v496 = vadd.f32 0.0, %v495
    %v497 = vpop.f32.mrf.mxu0
    %498 = vmatprep.mubr.f32.mxu0 0.0
    %499 = vmatmul.mubr.f32.gmra.mxu0 %v141
    %v500 = vpop.f32.mrf.mxu0
    %v501 = vadd.f32 0.0, %v500
    %v502 = vpop.f32.mrf.mxu0
    %503 = vdwg.mxu0
    %504 = vmatprep.subr.mxu0 0.0
    %505 = vmatpush1.msra.mxu0 0.0
    %506 = vmatprep.subr.mxu0 0.0
    %507 = vmatpush1.msra.mxu0 0.0
    %508 = vmatprep.subr.mxu0 0.0
    %509 = vmatpush1.msra.mxu0 0.0
    %510 = vmatprep.subr.mxu0 0.0
    %511 = vmatpush1.msra.mxu0 0.0
    %512 = vmatprep.subr.mxu0 0.0
    %513 = vmatpush1.msra.mxu0 0.0
    %514 = vmatprep.subr.mxu0 0.0
    %515 = vmatpush1.msra.mxu0 0.0
    %516 = vmatprep.subr.mxu0 0.0
    %517 = vmatpush1.msra.mxu0 0.0
    %518 = vmatprep.subr.mxu0 0.0
    %519 = vmatpush1.msra.mxu0 0.0
    %520 = vmatprep.subr.mxu0 0.0
    %521 = vmatpush1.msra.mxu0 0.0
    %522 = vmatprep.subr.mxu0 0.0
    %523 = vmatpush1.msra.mxu0 0.0
    %524 = vmatprep.subr.mxu0 0.0
    %525 = vmatpush1.msra.mxu0 0.0
    %526 = vmatprep.subr.mxu0 0.0
    %527 = vmatpush1.msra.mxu0 0.0
    %528 = vmatprep.subr.mxu0 0.0
    %529 = vmatpush1.msra.mxu0 0.0
    %530 = vmatprep.subr.mxu0 0.0
    %531 = vmatpush1.msra.mxu0 0.0
    %532 = vmatprep.subr.mxu0 0.0
    %533 = vmatpush1.msra.mxu0 %v426
    %534 = vmatprep.subr.mxu0 0.0
    %535 = vmatpush1.msra.mxu0 %v421
    %536 = vmatprep.subr.mxu0 0.0
    %537 = vmatpush2.msra.mxu0 0.0
    %538 = vmatprep.subr.mxu0 0.0
    %539 = vmatpush2.msra.mxu0 0.0
    %540 = vmatprep.subr.mxu0 0.0
    %541 = vmatpush2.msra.mxu0 0.0
    %542 = vmatprep.subr.mxu0 0.0
    %543 = vmatpush2.msra.mxu0 0.0
    %544 = vmatprep.subr.mxu0 0.0
    %545 = vmatpush2.msra.mxu0 0.0
    %546 = vmatprep.subr.mxu0 0.0
    %547 = vmatpush2.msra.mxu0 0.0
    %548 = vmatprep.subr.mxu0 0.0
    %549 = vmatpush2.msra.mxu0 0.0
    %550 = vmatprep.subr.mxu0 0.0
    %551 = vmatpush2.msra.mxu0 0.0
    %552 = vmatprep.subr.mxu0 0.0
    %553 = vmatpush2.msra.mxu0 0.0
    %554 = vmatprep.subr.mxu0 0.0
    %555 = vmatpush2.msra.mxu0 0.0
    %556 = vmatprep.subr.mxu0 0.0
    %557 = vmatpush2.msra.mxu0 0.0
    %558 = vmatprep.subr.mxu0 0.0
    %559 = vmatpush2.msra.mxu0 0.0
    %560 = vmatprep.subr.mxu0 0.0
    %561 = vmatpush2.msra.mxu0 0.0
    %562 = vmatprep.subr.mxu0 0.0
    %563 = vmatpush2.msra.mxu0 0.0
    %564 = vmatprep.subr.mxu0 0.0
    %565 = vmatpush2.msra.mxu0 0.0
    %566 = vmatprep.subr.mxu0 0.0
    %567 = vmatpush2.msra.mxu0 0.0
    %568 = vmatprep.mubr.f32.mxu0 0.0
    %569 = vmatmul.mubr.f32.gmra.mxu0 %v222
    %v570 = vpop.f32.mrf.mxu0
    %v571 = vadd.f32 0.0, %v570
    %v572 = vpop.f32.mrf.mxu0
    %573 = vmatprep.mubr.f32.mxu0 0.0
    %574 = vmatmul.mubr.f32.gmra.mxu0 %v225
    %v575 = vpop.f32.mrf.mxu0
    %v576 = vadd.f32 0.0, %v575
    %v577 = vpop.f32.mrf.mxu0
    %578 = vdwg.mxu0
    %v579 = vlaneseq
    %v580 = vshrl.u32 %v579, 7
    %v581 = vsub.s32 1, %v580
    %v582 = vrot.slane %v30, %v581
    %v583 = vadd.f32 %v496, %v582
    %v584 = vadd.f32 %v501, %v582
    %v585 = vadd.f32 %v571, %v582
    %v586 = vadd.f32 %v576, %v582
    %vm587 = vcmp.gt.f32.partialorder %v583, 0.0
    %vm588 = vcmp.gt.f32.partialorder %v584, 0.0
    %vm589 = vcmp.gt.f32.partialorder %v585, 0.0
    %vm590 = vcmp.gt.f32.partialorder %v586, 0.0
    %v591 = vmul.f32 %v317, %v583
    %v592 = vmul.f32 %v317, %v584
    %v593 = vmul.f32 %v317, %v585
    %v594 = vmul.f32 %v317, %v586
    %v595 = vsel %vm587, %v583, %v591
    %v596 = vsel %vm588, %v584, %v592
    %v597 = vsel %vm589, %v585, %v593
    %v598 = vsel %vm590, %v586, %v594
    %v599 = vld [vmem:[%s4] sm:$0xff]
    %v600 = vld [vmem:[%s4 + $0x8] sm:$0xff]
    %v602 = vsel %vm37, %v595, 0
    %v605 = vsel %vm37, %v596, 0
    %v608 = vsel %vm37, %v597, 0
    %v611 = vsel %vm37, %v598, 0
    %613 = vmatprep.subr.mxu0 0.0
    %614 = vmatpush1.msra.mxu0 0.0
    %615 = vmatprep.subr.mxu0 0.0
    %616 = vmatpush1.msra.mxu0 0.0
    %617 = vmatprep.subr.mxu0 0.0
    %618 = vmatpush1.msra.mxu0 0.0
    %619 = vmatprep.subr.mxu0 0.0
    %620 = vmatpush1.msra.mxu0 0.0
    %621 = vmatprep.subr.mxu0 0.0
    %622 = vmatpush1.msra.mxu0 0.0
    %623 = vmatprep.subr.mxu0 0.0
    %624 = vmatpush1.msra.mxu0 0.0
    %625 = vmatprep.subr.mxu0 0.0
    %626 = vmatpush1.msra.mxu0 0.0
    %627 = vmatprep.subr.mxu0 0.0
    %628 = vmatpush1.msra.mxu0 0.0
    %629 = vmatprep.subr.mxu0 0.0
    %630 = vmatpush1.msra.mxu0 0.0
    %631 = vmatprep.subr.mxu0 0.0
    %632 = vmatpush1.msra.mxu0 0.0
    %633 = vmatprep.subr.mxu0 0.0
    %634 = vmatpush1.msra.mxu0 0.0
    %635 = vmatprep.subr.mxu0 0.0
    %636 = vmatpush1.msra.mxu0 0.0
    %637 = vmatprep.subr.mxu0 0.0
    %638 = vmatpush1.msra.mxu0 0.0
    %639 = vmatprep.subr.mxu0 0.0
    %640 = vmatpush1.msra.mxu0 0.0
    %641 = vmatprep.subr.mxu0 0.0
    %642 = vmatpush1.msra.mxu0 %v600
    %643 = vmatprep.subr.mxu0 0.0
    %644 = vmatpush1.msra.mxu0 %v599
    %645 = vmatprep.subr.mxu0 0.0
    %646 = vmatpush2.msra.mxu0 0.0
    %647 = vmatprep.subr.mxu0 0.0
    %648 = vmatpush2.msra.mxu0 0.0
    %649 = vmatprep.subr.mxu0 0.0
    %650 = vmatpush2.msra.mxu0 0.0
    %651 = vmatprep.subr.mxu0 0.0
    %652 = vmatpush2.msra.mxu0 0.0
    %653 = vmatprep.subr.mxu0 0.0
    %654 = vmatpush2.msra.mxu0 0.0
    %655 = vmatprep.subr.mxu0 0.0
    %656 = vmatpush2.msra.mxu0 0.0
    %657 = vmatprep.subr.mxu0 0.0
    %658 = vmatpush2.msra.mxu0 0.0
    %659 = vmatprep.subr.mxu0 0.0
    %660 = vmatpush2.msra.mxu0 0.0
    %661 = vmatprep.subr.mxu0 0.0
    %662 = vmatpush2.msra.mxu0 0.0
    %663 = vmatprep.subr.mxu0 0.0
    %664 = vmatpush2.msra.mxu0 0.0
    %665 = vmatprep.subr.mxu0 0.0
    %666 = vmatpush2.msra.mxu0 0.0
    %667 = vmatprep.subr.mxu0 0.0
    %668 = vmatpush2.msra.mxu0 0.0
    %669 = vmatprep.subr.mxu0 0.0
    %670 = vmatpush2.msra.mxu0 0.0
    %671 = vmatprep.subr.mxu0 0.0
    %672 = vmatpush2.msra.mxu0 0.0
    %673 = vmatprep.subr.mxu0 0.0
    %674 = vmatpush2.msra.mxu0 0.0
    %675 = vmatprep.subr.mxu0 0.0
    %676 = vmatpush2.msra.mxu0 0.0
    %677 = vmatprep.mubr.f32.mxu0 0.0
    %678 = vmatmul.mubr.f32.gmra.mxu0 %v602
    %v679 = vpop.f32.mrf.mxu0
    %v680 = vadd.f32 0.0, %v679
    %v681 = vpop.f32.mrf.mxu0
    %682 = vmatprep.mubr.f32.mxu0 0.0
    %683 = vmatmul.mubr.f32.gmra.mxu0 %v605
    %v684 = vpop.f32.mrf.mxu0
    %v685 = vadd.f32 0.0, %v684
    %v686 = vpop.f32.mrf.mxu0
    %687 = vmatprep.mubr.f32.mxu0 0.0
    %688 = vmatmul.mubr.f32.gmra.mxu0 %v608
    %v689 = vpop.f32.mrf.mxu0
    %v690 = vadd.f32 0.0, %v689
    %v691 = vpop.f32.mrf.mxu0
    %692 = vmatprep.mubr.f32.mxu0 0.0
    %693 = vmatmul.mubr.f32.gmra.mxu0 %v611
    %v694 = vpop.f32.mrf.mxu0
    %v695 = vadd.f32 0.0, %v694
    %v696 = vpop.f32.mrf.mxu0
    %697 = vdwg.mxu0
    %698 = vmatprep.subr.mxu0 0.0
    %699 = vmatpush1.msra.mxu0 0.0
    %700 = vmatprep.subr.mxu0 0.0
    %701 = vmatpush1.msra.mxu0 0.0
    %702 = vmatprep.subr.mxu0 0.0
    %703 = vmatpush1.msra.mxu0 0.0
    %704 = vmatprep.subr.mxu0 0.0
    %705 = vmatpush1.msra.mxu0 0.0
    %706 = vmatprep.subr.mxu0 0.0
    %707 = vmatpush1.msra.mxu0 0.0
    %708 = vmatprep.subr.mxu0 0.0
    %709 = vmatpush1.msra.mxu0 0.0
    %710 = vmatprep.subr.mxu0 0.0
    %711 = vmatpush1.msra.mxu0 0.0
    %712 = vmatprep.subr.mxu0 0.0
    %713 = vmatpush1.msra.mxu0 0.0
    %714 = vmatprep.subr.mxu0 0.0
    %715 = vmatpush1.msra.mxu0 0.0
    %716 = vmatprep.subr.mxu0 0.0
    %717 = vmatpush1.msra.mxu0 0.0
    %718 = vmatprep.subr.mxu0 0.0
    %719 = vmatpush1.msra.mxu0 0.0
    %720 = vmatprep.subr.mxu0 0.0
    %721 = vmatpush1.msra.mxu0 0.0
    %722 = vmatprep.subr.mxu0 0.0
    %723 = vmatpush1.msra.mxu0 0.0
    %724 = vmatprep.subr.mxu0 0.0
    %725 = vmatpush1.msra.mxu0 0.0
    %726 = vmatprep.subr.mxu0 0.0
    %727 = vmatpush1.msra.mxu0 %v685
    %728 = vmatprep.subr.mxu0 0.0
    %729 = vmatpush1.msra.mxu0 %v680
    %730 = vmatprep.subr.mxu0 0.0
    %731 = vmatpush2.msra.mxu0 0.0
    %732 = vmatprep.subr.mxu0 0.0
    %733 = vmatpush2.msra.mxu0 0.0
    %734 = vmatprep.subr.mxu0 0.0
    %735 = vmatpush2.msra.mxu0 0.0
    %736 = vmatprep.subr.mxu0 0.0
    %737 = vmatpush2.msra.mxu0 0.0
    %738 = vmatprep.subr.mxu0 0.0
    %739 = vmatpush2.msra.mxu0 0.0
    %740 = vmatprep.subr.mxu0 0.0
    %741 = vmatpush2.msra.mxu0 0.0
    %742 = vmatprep.subr.mxu0 0.0
    %743 = vmatpush2.msra.mxu0 0.0
    %744 = vmatprep.subr.mxu0 0.0
    %745 = vmatpush2.msra.mxu0 0.0
    %746 = vmatprep.subr.mxu0 0.0
    %747 = vmatpush2.msra.mxu0 0.0
    %748 = vmatprep.subr.mxu0 0.0
    %749 = vmatpush2.msra.mxu0 0.0
    %750 = vmatprep.subr.mxu0 0.0
    %751 = vmatpush2.msra.mxu0 0.0
    %752 = vmatprep.subr.mxu0 0.0
    %753 = vmatpush2.msra.mxu0 0.0
    %754 = vmatprep.subr.mxu0 0.0
    %755 = vmatpush2.msra.mxu0 0.0
    %756 = vmatprep.subr.mxu0 0.0
    %757 = vmatpush2.msra.mxu0 0.0
    %758 = vmatprep.subr.mxu0 0.0
    %759 = vmatpush2.msra.mxu0 0.0
    %760 = vmatprep.subr.mxu0 0.0
    %761 = vmatpush2.msra.mxu0 0.0
    %762 = vmatprep.mubr.f32.mxu0 0.0
    %763 = vmatmul.mubr.f32.gmra.mxu0 %v138
    %v764 = vpop.f32.mrf.mxu0
    %v765 = vadd.f32 0.0, %v764
    %v766 = vpop.f32.mrf.mxu0
    %767 = vmatprep.mubr.f32.mxu0 0.0
    %768 = vmatmul.mubr.f32.gmra.mxu0 %v141
    %v769 = vpop.f32.mrf.mxu0
    %v770 = vadd.f32 0.0, %v769
    %v771 = vpop.f32.mrf.mxu0
    %772 = vdwg.mxu0
    %773 = vmatprep.subr.mxu0 0.0
    %774 = vmatpush1.msra.mxu0 0.0
    %775 = vmatprep.subr.mxu0 0.0
    %776 = vmatpush1.msra.mxu0 0.0
    %777 = vmatprep.subr.mxu0 0.0
    %778 = vmatpush1.msra.mxu0 0.0
    %779 = vmatprep.subr.mxu0 0.0
    %780 = vmatpush1.msra.mxu0 0.0
    %781 = vmatprep.subr.mxu0 0.0
    %782 = vmatpush1.msra.mxu0 0.0
    %783 = vmatprep.subr.mxu0 0.0
    %784 = vmatpush1.msra.mxu0 0.0
    %785 = vmatprep.subr.mxu0 0.0
    %786 = vmatpush1.msra.mxu0 0.0
    %787 = vmatprep.subr.mxu0 0.0
    %788 = vmatpush1.msra.mxu0 0.0
    %789 = vmatprep.subr.mxu0 0.0
    %790 = vmatpush1.msra.mxu0 0.0
    %791 = vmatprep.subr.mxu0 0.0
    %792 = vmatpush1.msra.mxu0 0.0
    %793 = vmatprep.subr.mxu0 0.0
    %794 = vmatpush1.msra.mxu0 0.0
    %795 = vmatprep.subr.mxu0 0.0
    %796 = vmatpush1.msra.mxu0 0.0
    %797 = vmatprep.subr.mxu0 0.0
    %798 = vmatpush1.msra.mxu0 0.0
    %799 = vmatprep.subr.mxu0 0.0
    %800 = vmatpush1.msra.mxu0 0.0
    %801 = vmatprep.subr.mxu0 0.0
    %802 = vmatpush1.msra.mxu0 %v695
    %803 = vmatprep.subr.mxu0 0.0
    %804 = vmatpush1.msra.mxu0 %v690
    %805 = vmatprep.subr.mxu0 0.0
    %806 = vmatpush2.msra.mxu0 0.0
    %807 = vmatprep.subr.mxu0 0.0
    %808 = vmatpush2.msra.mxu0 0.0
    %809 = vmatprep.subr.mxu0 0.0
    %810 = vmatpush2.msra.mxu0 0.0
    %811 = vmatprep.subr.mxu0 0.0
    %812 = vmatpush2.msra.mxu0 0.0
    %813 = vmatprep.subr.mxu0 0.0
    %814 = vmatpush2.msra.mxu0 0.0
    %815 = vmatprep.subr.mxu0 0.0
    %816 = vmatpush2.msra.mxu0 0.0
    %817 = vmatprep.subr.mxu0 0.0
    %818 = vmatpush2.msra.mxu0 0.0
    %819 = vmatprep.subr.mxu0 0.0
    %820 = vmatpush2.msra.mxu0 0.0
    %821 = vmatprep.subr.mxu0 0.0
    %822 = vmatpush2.msra.mxu0 0.0
    %823 = vmatprep.subr.mxu0 0.0
    %824 = vmatpush2.msra.mxu0 0.0
    %825 = vmatprep.subr.mxu0 0.0
    %826 = vmatpush2.msra.mxu0 0.0
    %827 = vmatprep.subr.mxu0 0.0
    %828 = vmatpush2.msra.mxu0 0.0
    %829 = vmatprep.subr.mxu0 0.0
    %830 = vmatpush2.msra.mxu0 0.0
    %831 = vmatprep.subr.mxu0 0.0
    %832 = vmatpush2.msra.mxu0 0.0
    %833 = vmatprep.subr.mxu0 0.0
    %834 = vmatpush2.msra.mxu0 0.0
    %835 = vmatprep.subr.mxu0 0.0
    %836 = vmatpush2.msra.mxu0 0.0
    %837 = vmatprep.mubr.f32.mxu0 0.0
    %838 = vmatmul.mubr.f32.gmra.mxu0 %v222
    %v839 = vpop.f32.mrf.mxu0
    %v840 = vadd.f32 0.0, %v839
    %v841 = vpop.f32.mrf.mxu0
    %842 = vmatprep.mubr.f32.mxu0 0.0
    %843 = vmatmul.mubr.f32.gmra.mxu0 %v225
    %v844 = vpop.f32.mrf.mxu0
    %v845 = vadd.f32 0.0, %v844
    %v846 = vpop.f32.mrf.mxu0
    %847 = vdwg.mxu0
    %v848 = vlaneseq
    %v849 = vshrl.u32 %v848, 7
    %v850 = vsub.s32 2, %v849
    %v851 = vrot.slane %v30, %v850
    %v852 = vadd.f32 %v765, %v851
    %v853 = vadd.f32 %v770, %v851
    %v854 = vadd.f32 %v840, %v851
    %v855 = vadd.f32 %v845, %v851
    %vm856 = vcmp.gt.f32.partialorder %v852, 0.0
    %vm857 = vcmp.gt.f32.partialorder %v853, 0.0
    %vm858 = vcmp.gt.f32.partialorder %v854, 0.0
    %vm859 = vcmp.gt.f32.partialorder %v855, 0.0
    %v860 = vmul.f32 %v317, %v852
    %v861 = vmul.f32 %v317, %v853
    %v862 = vmul.f32 %v317, %v854
    %v863 = vmul.f32 %v317, %v855
    %v864 = vsel %vm856, %v852, %v860
    %v865 = vsel %vm857, %v853, %v861
    %v866 = vsel %vm858, %v854, %v862
    %v867 = vsel %vm859, %v855, %v863
    %vm868 = vcmask 64512
    %v869 = vsel %vm868, %v864, 0.0
    %v870 = vsel %vm868, %v865, 0.0
    %v871 = vadd.f32 %v869, %v870
    %v872 = vrot.slane %v871, 4
    %v873 = vadd.f32 %v871, %v872
    %v874 = vrot.slane %v873, 2
    %v875 = vadd.f32 %v873, %v874
    %v876 = vrot.slane %v875, 1
    %v877 = vadd.f32 %v875, %v876
    %v878 = vrcp.pop 16.0
    %v879 = vmul.f32 %v877, %v878
    %v880 = vsel %vm868, %v864, -inf
    %v881 = vsel %vm868, %v865, -inf
    %v882 = vmax.f32 %v880, %v881
    %v883 = vrot.slane %v882, 4
    %v884 = vmax.f32 %v882, %v883
    %v885 = vrot.slane %v884, 2
    %v886 = vmax.f32 %v884, %v885
    %v887 = vrot.slane %v886, 1
    %v888 = vmax.f32 %v886, %v887
    %v889 = vsel %vm868, %v866, 0.0
    %v890 = vsel %vm868, %v867, 0.0
    %v891 = vadd.f32 %v889, %v890
    %v892 = vrot.slane %v891, 4
    %v893 = vadd.f32 %v891, %v892
    %v894 = vrot.slane %v893, 2
    %v895 = vadd.f32 %v893, %v894
    %v896 = vrot.slane %v895, 1
    %v897 = vadd.f32 %v895, %v896
    %v898 = vmul.f32 %v897, %v878
    %v899 = vsel %vm868, %v866, -inf
    %v900 = vsel %vm868, %v867, -inf
    %v901 = vmax.f32 %v899, %v900
    %v902 = vrot.slane %v901, 4
    %v903 = vmax.f32 %v901, %v902
    %v904 = vrot.slane %v903, 2
    %v905 = vmax.f32 %v903, %v904
    %v906 = vrot.slane %v905, 1
    %v907 = vmax.f32 %v905, %v906
    %vm908 = vcmask 1040384
    %v909 = vsel %vm908, %v879, %v898
    %v910 = vsel %vm908, %v888, %v907
    %v911 = vld [vmem:[%s6] sm:$0xff]
    %v912 = vld [vmem:[%s6 + $0x8] sm:$0xff]
    %v914 = vsel %vm868, %v910, 0
    %916 = vmatprep.subr.mxu0 0.0
    %917 = vmatpush1.msra.mxu0 0.0
    %918 = vmatprep.subr.mxu0 0.0
    %919 = vmatpush1.msra.mxu0 0.0
    %920 = vmatprep.subr.mxu0 0.0
    %921 = vmatpush1.msra.mxu0 0.0
    %922 = vmatprep.subr.mxu0 0.0
    %923 = vmatpush1.msra.mxu0 0.0
    %924 = vmatprep.subr.mxu0 0.0
    %925 = vmatpush1.msra.mxu0 0.0
    %926 = vmatprep.subr.mxu0 0.0
    %927 = vmatpush1.msra.mxu0 0.0
    %928 = vmatprep.subr.mxu0 0.0
    %929 = vmatpush1.msra.mxu0 0.0
    %930 = vmatprep.subr.mxu0 0.0
    %931 = vmatpush1.msra.mxu0 0.0
    %932 = vmatprep.subr.mxu0 0.0
    %933 = vmatpush1.msra.mxu0 0.0
    %934 = vmatprep.subr.mxu0 0.0
    %935 = vmatpush1.msra.mxu0 0.0
    %936 = vmatprep.subr.mxu0 0.0
    %937 = vmatpush1.msra.mxu0 0.0
    %938 = vmatprep.subr.mxu0 0.0
    %939 = vmatpush1.msra.mxu0 0.0
    %940 = vmatprep.subr.mxu0 0.0
    %941 = vmatpush1.msra.mxu0 0.0
    %942 = vmatprep.subr.mxu0 0.0
    %943 = vmatpush1.msra.mxu0 0.0
    %944 = vmatprep.subr.mxu0 0.0
    %945 = vmatpush1.msra.mxu0 0.0
    %946 = vmatprep.subr.mxu0 0.0
    %947 = vmatpush1.msra.mxu0 %v912
    %948 = vmatprep.subr.mxu0 0.0
    %949 = vmatpush2.msra.mxu0 0.0
    %950 = vmatprep.subr.mxu0 0.0
    %951 = vmatpush2.msra.mxu0 0.0
    %952 = vmatprep.subr.mxu0 0.0
    %953 = vmatpush2.msra.mxu0 0.0
    %954 = vmatprep.subr.mxu0 0.0
    %955 = vmatpush2.msra.mxu0 0.0
    %956 = vmatprep.subr.mxu0 0.0
    %957 = vmatpush2.msra.mxu0 0.0
    %958 = vmatprep.subr.mxu0 0.0
    %959 = vmatpush2.msra.mxu0 0.0
    %960 = vmatprep.subr.mxu0 0.0
    %961 = vmatpush2.msra.mxu0 0.0
    %962 = vmatprep.subr.mxu0 0.0
    %963 = vmatpush2.msra.mxu0 0.0
    %964 = vmatprep.subr.mxu0 0.0
    %965 = vmatpush2.msra.mxu0 0.0
    %966 = vmatprep.subr.mxu0 0.0
    %967 = vmatpush2.msra.mxu0 0.0
    %968 = vmatprep.subr.mxu0 0.0
    %969 = vmatpush2.msra.mxu0 0.0
    %970 = vmatprep.subr.mxu0 0.0
    %971 = vmatpush2.msra.mxu0 0.0
    %972 = vmatprep.subr.mxu0 0.0
    %973 = vmatpush2.msra.mxu0 0.0
    %974 = vmatprep.subr.mxu0 0.0
    %975 = vmatpush2.msra.mxu0 0.0
    %976 = vmatprep.subr.mxu0 0.0
    %977 = vmatpush2.msra.mxu0 0.0
    %978 = vmatprep.subr.mxu0 0.0
    %979 = vmatpush2.msra.mxu0 0.0
    %980 = vmatprep.mubr.f32.mxu0 0.0
    %981 = vmatmul.mubr.f32.gmra.mxu0 %v914
    %v982 = vpop.f32.mrf.mxu0
    %v983 = vadd.f32 0.0, %v982
    %v984 = vpop.f32.mrf.mxu0
    %985 = vdwg.mxu0
    %v987 = vsel %vm868, %v909, 0
    %989 = vmatprep.subr.mxu0 0.0
    %990 = vmatpush1.msra.mxu0 0.0
    %991 = vmatprep.subr.mxu0 0.0
    %992 = vmatpush1.msra.mxu0 0.0
    %993 = vmatprep.subr.mxu0 0.0
    %994 = vmatpush1.msra.mxu0 0.0
    %995 = vmatprep.subr.mxu0 0.0
    %996 = vmatpush1.msra.mxu0 0.0
    %997 = vmatprep.subr.mxu0 0.0
    %998 = vmatpush1.msra.mxu0 0.0
    %999 = vmatprep.subr.mxu0 0.0
    %1000 = vmatpush1.msra.mxu0 0.0
    %1001 = vmatprep.subr.mxu0 0.0
    %1002 = vmatpush1.msra.mxu0 0.0
    %1003 = vmatprep.subr.mxu0 0.0
    %1004 = vmatpush1.msra.mxu0 0.0
    %1005 = vmatprep.subr.mxu0 0.0
    %1006 = vmatpush1.msra.mxu0 0.0
    %1007 = vmatprep.subr.mxu0 0.0
    %1008 = vmatpush1.msra.mxu0 0.0
    %1009 = vmatprep.subr.mxu0 0.0
    %1010 = vmatpush1.msra.mxu0 0.0
    %1011 = vmatprep.subr.mxu0 0.0
    %1012 = vmatpush1.msra.mxu0 0.0
    %1013 = vmatprep.subr.mxu0 0.0
    %1014 = vmatpush1.msra.mxu0 0.0
    %1015 = vmatprep.subr.mxu0 0.0
    %1016 = vmatpush1.msra.mxu0 0.0
    %1017 = vmatprep.subr.mxu0 0.0
    %1018 = vmatpush1.msra.mxu0 0.0
    %1019 = vmatprep.subr.mxu0 0.0
    %1020 = vmatpush1.msra.mxu0 %v911
    %1021 = vmatprep.subr.mxu0 0.0
    %1022 = vmatpush2.msra.mxu0 0.0
    %1023 = vmatprep.subr.mxu0 0.0
    %1024 = vmatpush2.msra.mxu0 0.0
    %1025 = vmatprep.subr.mxu0 0.0
    %1026 = vmatpush2.msra.mxu0 0.0
    %1027 = vmatprep.subr.mxu0 0.0
    %1028 = vmatpush2.msra.mxu0 0.0
    %1029 = vmatprep.subr.mxu0 0.0
    %1030 = vmatpush2.msra.mxu0 0.0
    %1031 = vmatprep.subr.mxu0 0.0
    %1032 = vmatpush2.msra.mxu0 0.0
    %1033 = vmatprep.subr.mxu0 0.0
    %1034 = vmatpush2.msra.mxu0 0.0
    %1035 = vmatprep.subr.mxu0 0.0
    %1036 = vmatpush2.msra.mxu0 0.0
    %1037 = vmatprep.subr.mxu0 0.0
    %1038 = vmatpush2.msra.mxu0 0.0
    %1039 = vmatprep.subr.mxu0 0.0
    %1040 = vmatpush2.msra.mxu0 0.0
    %1041 = vmatprep.subr.mxu0 0.0
    %1042 = vmatpush2.msra.mxu0 0.0
    %1043 = vmatprep.subr.mxu0 0.0
    %1044 = vmatpush2.msra.mxu0 0.0
    %1045 = vmatprep.subr.mxu0 0.0
    %1046 = vmatpush2.msra.mxu0 0.0
    %1047 = vmatprep.subr.mxu0 0.0
    %1048 = vmatpush2.msra.mxu0 0.0
    %1049 = vmatprep.subr.mxu0 0.0
    %1050 = vmatpush2.msra.mxu0 0.0
    %1051 = vmatprep.subr.mxu0 0.0
    %1052 = vmatpush2.msra.mxu0 0.0
    %1053 = vmatprep.mubr.f32.mxu0 0.0
    %1054 = vmatmul.mubr.f32.gmra.mxu0 %v987
    %v1055 = vpop.f32.mrf.mxu0
    %v1056 = vadd.f32 %v983, %v1055
    %v1057 = vpop.f32.mrf.mxu0
    %1058 = vdwg.mxu0
    %v1059 = vlaneseq
    %v1060 = vshrl.u32 %v1059, 7
    %v1061 = vsub.s32 3, %v1060
    %v1062 = vrot.slane %v30, %v1061
    %v1063 = vadd.f32 %v1056, %v1062
    %vm1064 = vcmp.gt.f32.partialorder %v1063, 0.0
    %1065 = vrot.lane.b32.xlu0 %v315, 127
    %v1066 = vpop.permute.xlu0 %1065
    %s1067 = vtos %v1066
    %v1068 = vstv %s1067
    %v1070 = vmul.f32 %v1068, %v1063
    %v1071 = vsel %vm1064, %v1063, %v1070
    %v1072 = vld [vmem:[%s7] sm:$0xff]
    %v1073 = vlaneseq
    %v1074 = vshrl.u32 %v1073, 7
    %v1075 = vsub.s32 4, %v1074
    %v1076 = vrot.slane %v30, %v1075
    %v1078 = vsel %vm868, %v1071, 0
    %1080 = vmatprep.subr.mxu0 0.0
    %1081 = vmatpush1.msra.mxu0 0.0
    %1082 = vmatprep.subr.mxu0 0.0
    %1083 = vmatpush1.msra.mxu0 0.0
    %1084 = vmatprep.subr.mxu0 0.0
    %1085 = vmatpush1.msra.mxu0 0.0
    %1086 = vmatprep.subr.mxu0 0.0
    %1087 = vmatpush1.msra.mxu0 0.0
    %1088 = vmatprep.subr.mxu0 0.0
    %1089 = vmatpush1.msra.mxu0 0.0
    %1090 = vmatprep.subr.mxu0 0.0
    %1091 = vmatpush1.msra.mxu0 0.0
    %1092 = vmatprep.subr.mxu0 0.0
    %1093 = vmatpush1.msra.mxu0 0.0
    %1094 = vmatprep.subr.mxu0 0.0
    %1095 = vmatpush1.msra.mxu0 0.0
    %1096 = vmatprep.subr.mxu0 0.0
    %1097 = vmatpush1.msra.mxu0 0.0
    %1098 = vmatprep.subr.mxu0 0.0
    %1099 = vmatpush1.msra.mxu0 0.0
    %1100 = vmatprep.subr.mxu0 0.0
    %1101 = vmatpush1.msra.mxu0 0.0
    %1102 = vmatprep.subr.mxu0 0.0
    %1103 = vmatpush1.msra.mxu0 0.0
    %1104 = vmatprep.subr.mxu0 0.0
    %1105 = vmatpush1.msra.mxu0 0.0
    %1106 = vmatprep.subr.mxu0 0.0
    %1107 = vmatpush1.msra.mxu0 0.0
    %1108 = vmatprep.subr.mxu0 0.0
    %1109 = vmatpush1.msra.mxu0 0.0
    %1110 = vmatprep.subr.mxu0 0.0
    %1111 = vmatpush1.msra.mxu0 %v1072
    %1112 = vmatprep.subr.mxu0 0.0
    %1113 = vmatpush2.msra.mxu0 0.0
    %1114 = vmatprep.subr.mxu0 0.0
    %1115 = vmatpush2.msra.mxu0 0.0
    %1116 = vmatprep.subr.mxu0 0.0
    %1117 = vmatpush2.msra.mxu0 0.0
    %1118 = vmatprep.subr.mxu0 0.0
    %1119 = vmatpush2.msra.mxu0 0.0
    %1120 = vmatprep.subr.mxu0 0.0
    %1121 = vmatpush2.msra.mxu0 0.0
    %1122 = vmatprep.subr.mxu0 0.0
    %1123 = vmatpush2.msra.mxu0 0.0
    %1124 = vmatprep.subr.mxu0 0.0
    %1125 = vmatpush2.msra.mxu0 0.0
    %1126 = vmatprep.subr.mxu0 0.0
    %1127 = vmatpush2.msra.mxu0 0.0
    %1128 = vmatprep.subr.mxu0 0.0
    %1129 = vmatpush2.msra.mxu0 0.0
    %1130 = vmatprep.subr.mxu0 0.0
    %1131 = vmatpush2.msra.mxu0 0.0
    %1132 = vmatprep.subr.mxu0 0.0
    %1133 = vmatpush2.msra.mxu0 0.0
    %1134 = vmatprep.subr.mxu0 0.0
    %1135 = vmatpush2.msra.mxu0 0.0
    %1136 = vmatprep.subr.mxu0 0.0
    %1137 = vmatpush2.msra.mxu0 0.0
    %1138 = vmatprep.subr.mxu0 0.0
    %1139 = vmatpush2.msra.mxu0 0.0
    %1140 = vmatprep.subr.mxu0 0.0
    %1141 = vmatpush2.msra.mxu0 0.0
    %1142 = vmatprep.subr.mxu0 0.0
    %1143 = vmatpush2.msra.mxu0 0.0
    %1144 = vmatprep.mubr.f32.mxu0 0.0
    %1145 = vmatmul.mubr.f32.gmra.mxu0 %v1078
    %v1146 = vpop.f32.mrf.mxu0
    %v1147 = vadd.f32 %v1076, %v1146
    %v1148 = vpop.f32.mrf.mxu0
    %1149 = vdwg.mxu0
    %vm1150 = vcmask 25600
    %1151 = vst.msk [vmem:[#allocation2] sm:$0x3] %vm1150, %v1147
    // Predicated region
    $region34: #{tpu_custom_call.1} parent=1 // pred_check
      _
    $region35: #{tpu_custom_call.1} parent=1 // pred_check_branch
      %1153 = sbr.rel (0) target = $region37
    $region36: #{tpu_custom_call.1} parent=1 // pred_region
      %s1155 = ssub.s32 32, 32
      %1156 = vsyncadd [#allocation3], %s1155
      %s1158 = sshll.u32 [#allocation2], 4
      %s1159 = int_to_ptr.vmem [resolvable:$true] %s1158
      %1161 = dma.vmem_to_hbm [thread:$0]  %s1159, 32, %s8, [#allocation3]
    $region37: #{tpu_custom_call.1} parent=1 // pred_fallthru
      _
    // Predicated region
    $region38: #{tpu_custom_call.1} parent=1 // pred_check
      _
    $region39: #{tpu_custom_call.1} parent=1 // pred_check_branch
      %1163 = sbr.rel (0) target = $region41
    $region40: #{tpu_custom_call.1} parent=1 // pred_region
      %1164 = dma.done [#allocation3], 32
    $region41: #{tpu_custom_call.1} parent=1 // pred_fallthru
      _
    %1165 = vsyncpa [#allocation3], 1

</llo_original>
